<compile_context>
chip_gen: v7x
topology: tpu7x:2x2x1
jax: 0.10.0
libtpu: 0.0.40
codegen_flags: <defaults>
</compile_context>

<pallas_src>
import jax
import jax.numpy as jnp
import numpy as np
from jax.experimental import pallas as pl
from jax.experimental.pallas import tpu as pltpu


def _round_up(x, m):
    return (x + m - 1) // m * m


def matrix_kernel(x_ref, w1_ref, b1_ref, w2_ref, b2_ref, o_ref):
    # Packed state after all `steps` (chain + pre_linear already folded into w1/b1).
    s = jnp.dot(x_ref[...], w1_ref[...], preferred_element_type=jnp.float32)
    s = s + b1_ref[...]                                   # f32 bias add (VPU)
    # post_linear on the lane-dense slab -> lane-dense (tb, out_pad) store.
    o = jnp.dot(s.astype(w2_ref.dtype), w2_ref[...],
                preferred_element_type=jnp.float32)
    o_ref[...] = o + b2_ref[...]


def _affine_power(w, b, n):
    """(w, b)^n under composition of  S -> S @ w + b  (exponentiation by squaring)."""
    nd = w.shape[0]
    wr = jnp.eye(nd, dtype=w.dtype)
    br = jnp.zeros_like(b)
    wp, bp = w, b
    n = int(n)
    while n > 0:
        if n & 1:
            wr, br = wr @ wp, br @ wp + bp
        n >>= 1
        if n:
            wp, bp = wp @ wp, bp @ wp + bp
    return wr, br


def matrix_forward(x, params, *, num, dim, steps, mxu_dtype=jnp.float32):
    wpre, bpre, wlink, blink, life, wpost, bpost = params
    B, in_ch = x.shape
    out_ch = wpost.shape[1]
    nd = num * dim
    out_pad = _round_up(out_ch, 128)          # lane-dense output slab

    # ---- batch-invariant parameter folding (tiny XLA matmuls, f32) ----
    life_pos = jnp.where(life > 0, life, 0.0)                       # life>0 gate
    wbig = (life_pos[:, :, None, None] * wlink)                     # (num,num,dim,dim)
    wbig = wbig.transpose(0, 2, 1, 3).reshape(nd, nd)               # [(i,a),(j,b)]
    bflat = (life_pos[:, :, None] * blink).sum(axis=0).reshape(1, nd)

    # Fold the `steps` chain:  S_final = S0 @ wchain + bchain
    wchain, bchain = _affine_power(wbig, bflat, steps)

    # Fold pre_linear into the chain (S0 = x @ wpre_pad + bpre_pad).
    wpre_pad = jnp.zeros((in_ch, nd), jnp.float32).at[:, :dim].set(wpre)
    bpre_pad = jnp.zeros((1, nd), jnp.float32).at[:, :dim].set(bpre.reshape(1, dim))
    w1 = wpre_pad @ wchain                                          # (in_ch, nd)
    b1 = bpre_pad @ wchain + bchain                                 # (1, nd)

    # post_linear consumes the full lane-dense slab; pad out_ch -> out_pad lanes.
    w2 = jnp.zeros((nd, out_pad), jnp.float32).at[(num - 1) * dim:, :out_ch].set(wpost)
    b2 = jnp.zeros((1, out_pad), jnp.float32).at[:, :out_ch].set(bpost.reshape(1, out_ch))

    # MXU operand dtype (bf16 option for v6e/v7x throughput); biases stay f32.
    x_k = x.astype(mxu_dtype)
    w1 = w1.astype(mxu_dtype)
    w2 = w2.astype(mxu_dtype)

    # ---- batch tiling: 128-row tiles, batch zero-padded to a multiple of 128 ----
    if B >= 128:
        tb = 128
        b_pad = _round_up(B, tb)
    else:
        tb = B                   # single full-array tile for tiny batches (demo B=2)
        b_pad = B
    if b_pad != B:
        x_k = jnp.pad(x_k, ((0, b_pad - B), (0, 0)))
    grid = (b_pad // tb,)

    out = pl.pallas_call(
        matrix_kernel,
        out_shape=jax.ShapeDtypeStruct((b_pad, out_pad), jnp.float32),
        grid=grid,
        in_specs=[
            pl.BlockSpec((tb, in_ch), lambda i: (i, 0)),       # x (batch tiled)
            pl.BlockSpec((in_ch, nd), lambda i: (0, 0)),       # w1 = wpre_pad @ wchain
            pl.BlockSpec((1, nd), lambda i: (0, 0)),           # b1
            pl.BlockSpec((nd, out_pad), lambda i: (0, 0)),     # w2 (post, lane-padded)
            pl.BlockSpec((1, out_pad), lambda i: (0, 0)),      # b2
        ],
        out_specs=pl.BlockSpec((tb, out_pad), lambda i: (i, 0)),
        compiler_params=pltpu.CompilerParams(
            dimension_semantics=("parallel",)),
    )(x_k, w1, b1, w2, b2)

    return out[:B, :out_ch]


def matrix_reference(x, params, *, num, dim, steps):
    """Pure-JAX replica of the PyTorch forward (loop-by-loop, step-by-step)."""
    wpre, bpre, wlink, blink, life, wpost, bpost = params
    h = x @ wpre + bpre
    mat = [jnp.zeros_like(h) for _ in range(num)]
    mat[0] = h
    for _ in range(steps):
        mat2 = [jnp.zeros_like(h) for _ in range(num)]
        for i in range(num):
            for j in range(num):
                if float(life[i, j]) > 0:
                    mat2[j] = mat2[j] + life[i, j] * (mat[i] @ wlink[i, j] + blink[i, j])
        mat = mat2
    return mat[num - 1] @ wpost + bpost


def init_params(key, in_ch, out_ch, num, dim):
    k = jax.random.split(key, 7)
    wpre = jax.random.uniform(k[0], (in_ch, dim), jnp.float32, -0.2, 0.2)
    bpre = jax.random.uniform(k[1], (dim,), jnp.float32, -0.2, 0.2)
    # small link weights keep the `steps` iterations numerically tame
    wlink = jax.random.uniform(k[2], (num, num, dim, dim), jnp.float32, -0.02, 0.02)
    blink = jax.random.uniform(k[3], (num, num, dim), jnp.float32, -0.1, 0.1)
    # matches torch.rand(1) + 0.5 -> all strictly positive
    life = jax.random.uniform(k[4], (num, num), jnp.float32, 0.5, 1.5)
    wpost = jax.random.uniform(k[5], (dim, out_ch), jnp.float32, -0.2, 0.2)
    bpost = jax.random.uniform(k[6], (out_ch,), jnp.float32, -0.2, 0.2)
    return (wpre, bpre, wlink, blink, life, wpost, bpost)


if __name__ == "__main__":
    B, IN_CH, OUT_CH = 2, 8, 4
    NUM, DIM = 4, 32          # num*dim = 128 -> one lane-width state slab
    STEPS = 10

    key = jax.random.PRNGKey(0)
    kx, kp = jax.random.split(key)
    x = jax.random.normal(kx, (B, IN_CH), jnp.float32)
    params = init_params(kp, IN_CH, OUT_CH, NUM, DIM)

    out = matrix_forward(x, params, num=NUM, dim=DIM, steps=STEPS)
    out = jax.block_until_ready(out)

    ref = matrix_reference(x, params, num=NUM, dim=DIM, steps=STEPS)
    np.testing.assert_allclose(np.asarray(out), np.asarray(ref), rtol=1e-4, atol=1e-4)

    print("KERNEL_OK")
</pallas_src>

<mosaic_0001>
module attributes {stable_mosaic.version = 11 : i64} {
  func.func @matrix_kernel(%arg0: i32, %arg1: memref<2x8xf32, #tpu.memory_space<vmem>>, %arg2: memref<8x128xf32, #tpu.memory_space<vmem>>, %arg3: memref<1x128xf32, #tpu.memory_space<vmem>>, %arg4: memref<128x128xf32, #tpu.memory_space<vmem>>, %arg5: memref<1x128xf32, #tpu.memory_space<vmem>>, %arg6: memref<2x128xf32, #tpu.memory_space<vmem>>) attributes {dimension_semantics = [#tpu.dimension_semantics<parallel>], iteration_bounds = array<i64: 1>, scalar_prefetch = 0 : i64, scratch_operands = 0 : i64, tpu.core_type = #tpu.core_type<tc>, window_params = [{transform_indices = @transform_0, window_bounds = array<i64: 2, 8>}, {pipeline_mode = #tpu.pipeline_mode<synchronous>, transform_indices = @transform_1, window_bounds = array<i64: 8, 128>}, {pipeline_mode = #tpu.pipeline_mode<synchronous>, transform_indices = @transform_2, window_bounds = array<i64: 1, 128>}, {pipeline_mode = #tpu.pipeline_mode<synchronous>, transform_indices = @transform_3, window_bounds = array<i64: 128, 128>}, {pipeline_mode = #tpu.pipeline_mode<synchronous>, transform_indices = @transform_4, window_bounds = array<i64: 1, 128>}, {transform_indices = @transform_5, window_bounds = array<i64: 2, 128>}]} {
    %c0 = arith.constant 0 : index
    %c0_0 = arith.constant 0 : index
    %0 = vector.load %arg1[%c0, %c0_0] : memref<2x8xf32, #tpu.memory_space<vmem>>, vector<2x8xf32>
    %c0_1 = arith.constant 0 : index
    %c0_2 = arith.constant 0 : index
    %1 = vector.load %arg2[%c0_1, %c0_2] : memref<8x128xf32, #tpu.memory_space<vmem>>, vector<8x128xf32>
    %cst = arith.constant dense<0.000000e+00> : vector<2x128xf32>
    %2 = tpu.matmul %0, %1, %cst {dimension_numbers = #tpu.dot_dimension_numbers<[1], [0], [0], [1], [0, 0, 1, 1], [], []>} : vector<2x8xf32>, vector<8x128xf32>, vector<2x128xf32> -> vector<2x128xf32>
    %c0_3 = arith.constant 0 : index
    %c0_4 = arith.constant 0 : index
    %3 = vector.load %arg3[%c0_3, %c0_4] : memref<1x128xf32, #tpu.memory_space<vmem>>, vector<1x128xf32>
    %4 = vector.broadcast %3 : vector<1x128xf32> to vector<2x128xf32>
    %5 = arith.addf %2, %4 : vector<2x128xf32>
    %c0_5 = arith.constant 0 : index
    %c0_6 = arith.constant 0 : index
    %6 = vector.load %arg4[%c0_5, %c0_6] : memref<128x128xf32, #tpu.memory_space<vmem>>, vector<128x128xf32>
    %cst_7 = arith.constant dense<0.000000e+00> : vector<2x128xf32>
    %7 = tpu.matmul %5, %6, %cst_7 {dimension_numbers = #tpu.dot_dimension_numbers<[1], [0], [0], [1], [0, 0, 1, 1], [], []>} : vector<2x128xf32>, vector<128x128xf32>, vector<2x128xf32> -> vector<2x128xf32>
    %c0_8 = arith.constant 0 : index
    %c0_9 = arith.constant 0 : index
    %8 = vector.load %arg5[%c0_8, %c0_9] : memref<1x128xf32, #tpu.memory_space<vmem>>, vector<1x128xf32>
    %9 = vector.broadcast %8 : vector<1x128xf32> to vector<2x128xf32>
    %10 = arith.addf %7, %9 : vector<2x128xf32>
    %c0_10 = arith.constant 0 : index
    %c0_11 = arith.constant 0 : index
    %11 = vector.load %arg6[%c0_10, %c0_11] : memref<2x128xf32, #tpu.memory_space<vmem>>, vector<2x128xf32>
    tpu.vector_store %arg6[%c0_10, %c0_11], %10 {strides = array<i32>} : memref<2x128xf32, #tpu.memory_space<vmem>>, vector<2x128xf32>,
    return
  }
  func.func @transform_0(%arg0: i32) -> (i32, i32) {
    %c0_i32 = arith.constant 0 : i32
    %c0_i32_0 = arith.constant 0 : i32
    return %arg0, %c0_i32 : i32, i32
  }
  func.func @transform_1(%arg0: i32) -> (i32, i32) {
    %c0_i32 = arith.constant 0 : i32
    %c0_i32_0 = arith.constant 0 : i32
    %c0_i32_1 = arith.constant 0 : i32
    return %c0_i32, %c0_i32_0 : i32, i32
  }
  func.func @transform_2(%arg0: i32) -> (i32, i32) {
    %c0_i32 = arith.constant 0 : i32
    %c0_i32_0 = arith.constant 0 : i32
    %c0_i32_1 = arith.constant 0 : i32
    return %c0_i32, %c0_i32_0 : i32, i32
  }
  func.func @transform_3(%arg0: i32) -> (i32, i32) {
    %c0_i32 = arith.constant 0 : i32
    %c0_i32_0 = arith.constant 0 : i32
    %c0_i32_1 = arith.constant 0 : i32
    return %c0_i32, %c0_i32_0 : i32, i32
  }
  func.func @transform_4(%arg0: i32) -> (i32, i32) {
    %c0_i32 = arith.constant 0 : i32
    %c0_i32_0 = arith.constant 0 : i32
    %c0_i32_1 = arith.constant 0 : i32
    return %c0_i32, %c0_i32_0 : i32, i32
  }
  func.func @transform_5(%arg0: i32) -> (i32, i32) {
    %c0_i32 = arith.constant 0 : i32
    %c0_i32_0 = arith.constant 0 : i32
    return %arg0, %c0_i32 : i32, i32
  }
}

</mosaic_0001>

<llo_original>
// kernel: tpu_custom_call.1
$region0: #{tpu_custom_call.1}
  #allocation0 [shape = 'u32[]', space=smem, size = 0x4, offset = 0x4, fixed_abs, tag = 'smem constant byte address 0x4 - core index']
  #allocation1 [shape = 'u32[144,128]{1,0:T(1,128)}', space=vmem, size = 0x12000, scoped, tag = 'internal scratch']
  %s0 = inlined_call_operand.hbm [shape: f32[2,8], index: 0, kind: input, shape index: {}]
  %s1 = inlined_call_operand.hbm [shape: f32[8,128], index: 1, kind: input, shape index: {}]
  %s2 = inlined_call_operand.vmem [shape: f32[1,128], index: 2, kind: input, shape index: {}]
  %s3 = inlined_call_operand.hbm [shape: f32[128,128], index: 3, kind: input, shape index: {}]
  %s4 = inlined_call_operand.vmem [shape: f32[1,128], index: 4, kind: input, shape index: {}]
  %s5 = inlined_call_operand.hbm [shape: f32[2,128], index: 5, kind: output, shape index: {}]
  %s6 = sld [smem:[#allocation0]]
  $region42: #{tpu_custom_call.1} parent=0
    _
  %s8 = ssub.s32 1, %s6
  %s9 = scalar_select 0, %s8, %s6
  $region1: #{tpu_custom_call.1} parent=0
    #allocation2 [shape = 'u8[1024]{0}', space=vmem, size = 0x400, scoped, tag = 'input window, operand 0, single buffered']
    #allocation3 [shape = 's32[1]{0}', space=sflag, size = 0x4, scoped, tag = 'scoped memory for tpu_custom_call.1']
    #allocation4 [shape = 's32[1]{0}', space=sflag, size = 0x4, scoped, tag = 'scoped memory for tpu_custom_call.1']
    #allocation5 [shape = 'u8[4096]{0}', space=vmem, size = 0x1000, scoped, tag = 'input window, operand 1, single buffered']
    #allocation6 [shape = 's32[1]{0}', space=sflag, size = 0x4, scoped, tag = 'scoped memory for tpu_custom_call.1']
    #allocation7 [shape = 'u8[65536]{0}', space=vmem, size = 0x10000, scoped, tag = 'input window, operand 3, single buffered']
    #allocation8 [shape = 'u8[1024]{0}', space=vmem, size = 0x400, scoped, tag = 'output window, operand 0, single buffered']
    %10 = vsyncpa [#allocation3], 0
    %11 = vsyncpa [#allocation6], 0
    %12 = vsyncpa [#allocation4], 0
    // Predicated region
    $region2: #{tpu_custom_call.1} parent=1 // pred_check
      _
    $region3: #{tpu_custom_call.1} parent=1 // pred_check_branch
      %14 = sbr.rel (0) target = $region5
    $region4: #{tpu_custom_call.1} parent=1 // pred_region
      %s16 = ssub.s32 32, 32
      %17 = vsyncadd [#allocation3], %s16
      %s19 = sshll.u32 [#allocation2], 4
      %s20 = int_to_ptr.vmem [resolvable:$true] %s19
      %22 = dma.hbm_to_vmem [thread:$0]  %s0, 32, %s20, [#allocation3]
    $region5: #{tpu_custom_call.1} parent=1 // pred_fallthru
      _
    // Predicated region
    $region6: #{tpu_custom_call.1} parent=1 // pred_check
      _
    $region7: #{tpu_custom_call.1} parent=1 // pred_check_branch
      %24 = sbr.rel (0) target = $region9
    $region8: #{tpu_custom_call.1} parent=1 // pred_region
      %s26 = ssub.s32 128, 128
      %27 = vsyncadd [#allocation6], %s26
      %s29 = sshll.u32 [#allocation5], 4
      %s30 = int_to_ptr.vmem [resolvable:$true] %s29
      %32 = dma.hbm_to_vmem [thread:$0]  %s1, 128, %s30, [#allocation6]
    $region9: #{tpu_custom_call.1} parent=1 // pred_fallthru
      _
    // Predicated region
    $region10: #{tpu_custom_call.1} parent=1 // pred_check
      _
    $region11: #{tpu_custom_call.1} parent=1 // pred_check_branch
      %34 = sbr.rel (0) target = $region13
    $region12: #{tpu_custom_call.1} parent=1 // pred_region
      _
    $region13: #{tpu_custom_call.1} parent=1 // pred_fallthru
      _
    // Predicated region
    $region14: #{tpu_custom_call.1} parent=1 // pred_check
      _
    $region15: #{tpu_custom_call.1} parent=1 // pred_check_branch
      %36 = sbr.rel (0) target = $region17
    $region16: #{tpu_custom_call.1} parent=1 // pred_region
      %s38 = ssub.s32 2048, 2048
      %39 = vsyncadd [#allocation6], %s38
      %s40 = sshll.u32 [#allocation7], 4
      %s41 = int_to_ptr.vmem [resolvable:$true] %s40
      %46 = dma.hbm_to_vmem [thread:$0]  %s3, 2048, %s41, [#allocation6], 128, 128, 8
    $region17: #{tpu_custom_call.1} parent=1 // pred_fallthru
      _
    // Predicated region
    $region18: #{tpu_custom_call.1} parent=1 // pred_check
      _
    $region19: #{tpu_custom_call.1} parent=1 // pred_check_branch
      %48 = sbr.rel (0) target = $region21
    $region20: #{tpu_custom_call.1} parent=1 // pred_region
      _
    $region21: #{tpu_custom_call.1} parent=1 // pred_fallthru
      _
    // Predicated region
    $region22: #{tpu_custom_call.1} parent=1 // pred_check
      _
    $region23: #{tpu_custom_call.1} parent=1 // pred_check_branch
      %50 = sbr.rel (0) target = $region25
    $region24: #{tpu_custom_call.1} parent=1 // pred_region
      %51 = dma.done [#allocation3], 32
    $region25: #{tpu_custom_call.1} parent=1 // pred_fallthru
      _
    // Predicated region
    $region26: #{tpu_custom_call.1} parent=1 // pred_check
      _
    $region27: #{tpu_custom_call.1} parent=1 // pred_check_branch
      %53 = sbr.rel (0) target = $region29
    $region28: #{tpu_custom_call.1} parent=1 // pred_region
      %54 = dma.done [#allocation6], 128
    $region29: #{tpu_custom_call.1} parent=1 // pred_fallthru
      _
    // Predicated region
    $region30: #{tpu_custom_call.1} parent=1 // pred_check
      _
    $region31: #{tpu_custom_call.1} parent=1 // pred_check_branch
      %56 = sbr.rel (0) target = $region33
    $region32: #{tpu_custom_call.1} parent=1 // pred_region
      %57 = dma.done [#allocation6], 2048
    $region33: #{tpu_custom_call.1} parent=1 // pred_fallthru
      _
    %v58 = vld [vmem:[#allocation2] sm:$0x3]
    %v59 = vld [vmem:[#allocation5] sm:$0xff]
    %v60 = vld [vmem:[%s2] sm:$0x1]
    %v62 = vlaneseq
    %v63 = vshrl.u32 %v62, 7
    %v64 = vsub.s32 0, %v63
    %v65 = vrot.slane %v60, %v64
    %vm67 = vcmask 64512
    %v69 = vsel %vm67, %v58, 0
    %71 = vmatprep.subr.mxu0 0.0
    %72 = vmatpush1.msra.mxu0 %v59
    %73 = vmatprep.subr.mxu0 0.0
    %74 = vmatpush1.msra.mxu0 0.0
    %75 = vmatprep.subr.mxu0 0.0
    %76 = vmatpush1.msra.mxu0 0.0
    %77 = vmatprep.subr.mxu0 0.0
    %78 = vmatpush1.msra.mxu0 0.0
    %79 = vmatprep.subr.mxu0 0.0
    %80 = vmatpush1.msra.mxu0 0.0
    %81 = vmatprep.subr.mxu0 0.0
    %82 = vmatpush1.msra.mxu0 0.0
    %83 = vmatprep.subr.mxu0 0.0
    %84 = vmatpush1.msra.mxu0 0.0
    %85 = vmatprep.subr.mxu0 0.0
    %86 = vmatpush1.msra.mxu0 0.0
    %87 = vmatprep.subr.mxu0 0.0
    %88 = vmatpush1.msra.mxu0 0.0
    %89 = vmatprep.subr.mxu0 0.0
    %90 = vmatpush1.msra.mxu0 0.0
    %91 = vmatprep.subr.mxu0 0.0
    %92 = vmatpush1.msra.mxu0 0.0
    %93 = vmatprep.subr.mxu0 0.0
    %94 = vmatpush1.msra.mxu0 0.0
    %95 = vmatprep.subr.mxu0 0.0
    %96 = vmatpush1.msra.mxu0 0.0
    %97 = vmatprep.subr.mxu0 0.0
    %98 = vmatpush1.msra.mxu0 0.0
    %99 = vmatprep.subr.mxu0 0.0
    %100 = vmatpush1.msra.mxu0 0.0
    %101 = vmatprep.subr.mxu0 0.0
    %102 = vmatpush1.msra.mxu0 0.0
    %103 = vmatprep.subr.mxu0 0.0
    %104 = vmatpush1.msra.mxu0 0.0
    %105 = vmatprep.subr.mxu0 0.0
    %106 = vmatpush1.msra.mxu0 0.0
    %107 = vmatprep.subr.mxu0 0.0
    %108 = vmatpush1.msra.mxu0 0.0
    %109 = vmatprep.subr.mxu0 0.0
    %110 = vmatpush1.msra.mxu0 0.0
    %111 = vmatprep.subr.mxu0 0.0
    %112 = vmatpush1.msra.mxu0 0.0
    %113 = vmatprep.subr.mxu0 0.0
    %114 = vmatpush1.msra.mxu0 0.0
    %115 = vmatprep.subr.mxu0 0.0
    %116 = vmatpush1.msra.mxu0 0.0
    %117 = vmatprep.subr.mxu0 0.0
    %118 = vmatpush1.msra.mxu0 0.0
    %119 = vmatprep.subr.mxu0 0.0
    %120 = vmatpush1.msra.mxu0 0.0
    %121 = vmatprep.subr.mxu0 0.0
    %122 = vmatpush1.msra.mxu0 0.0
    %123 = vmatprep.subr.mxu0 0.0
    %124 = vmatpush1.msra.mxu0 0.0
    %125 = vmatprep.subr.mxu0 0.0
    %126 = vmatpush1.msra.mxu0 0.0
    %127 = vmatprep.subr.mxu0 0.0
    %128 = vmatpush1.msra.mxu0 0.0
    %129 = vmatprep.subr.mxu0 0.0
    %130 = vmatpush1.msra.mxu0 0.0
    %131 = vmatprep.subr.mxu0 0.0
    %132 = vmatpush1.msra.mxu0 0.0
    %133 = vmatprep.subr.mxu0 0.0
    %134 = vmatpush1.msra.mxu0 0.0
    %135 = vmatprep.mubr.f32.mxu0 0.0
    %136 = vmatmul.mubr.f32.gmra.mrb[0].mxu0 %v69
    %v137 = vpop.f32.mrb[0].mxu0
    %v138 = vadd.f32 %v65, %v137
    %v139 = vpop.f32.mrb[0].mxu0
    %140 = vdwg.mxu0
    %v141 = vld [vmem:[#allocation7] sm:$0xff]
    %v142 = vld [vmem:[#allocation7 + $0x8] sm:$0xff]
    %v143 = vld [vmem:[#allocation7 + $0x10] sm:$0xff]
    %v144 = vld [vmem:[#allocation7 + $0x18] sm:$0xff]
    %v145 = vld [vmem:[#allocation7 + $0x20] sm:$0xff]
    %v146 = vld [vmem:[#allocation7 + $0x28] sm:$0xff]
    %v147 = vld [vmem:[#allocation7 + $0x30] sm:$0xff]
    %v148 = vld [vmem:[#allocation7 + $0x38] sm:$0xff]
    %v149 = vld [vmem:[#allocation7 + $0x40] sm:$0xff]
    %v150 = vld [vmem:[#allocation7 + $0x48] sm:$0xff]
    %v151 = vld [vmem:[#allocation7 + $0x50] sm:$0xff]
    %v152 = vld [vmem:[#allocation7 + $0x58] sm:$0xff]
    %v153 = vld [vmem:[#allocation7 + $0x60] sm:$0xff]
    %v154 = vld [vmem:[#allocation7 + $0x68] sm:$0xff]
    %v155 = vld [vmem:[#allocation7 + $0x70] sm:$0xff]
    %v156 = vld [vmem:[#allocation7 + $0x78] sm:$0xff]
    %v157 = vld [vmem:[%s4] sm:$0x1]
    %v159 = vlaneseq
    %v160 = vshrl.u32 %v159, 7
    %v161 = vsub.s32 0, %v160
    %v162 = vrot.slane %v157, %v161
    %164 = vmatprep.subr.mxu0 0.0
    %165 = vmatpush1.msra.mxu0 %v141
    %166 = vmatprep.subr.mxu0 0.0
    %167 = vmatpush1.msra.mxu0 %v142
    %168 = vmatprep.subr.mxu0 0.0
    %169 = vmatpush1.msra.mxu0 %v143
    %170 = vmatprep.subr.mxu0 0.0
    %171 = vmatpush1.msra.mxu0 %v144
    %172 = vmatprep.subr.mxu0 0.0
    %173 = vmatpush1.msra.mxu0 %v145
    %174 = vmatprep.subr.mxu0 0.0
    %175 = vmatpush1.msra.mxu0 %v146
    %176 = vmatprep.subr.mxu0 0.0
    %177 = vmatpush1.msra.mxu0 %v147
    %178 = vmatprep.subr.mxu0 0.0
    %179 = vmatpush1.msra.mxu0 %v148
    %180 = vmatprep.subr.mxu0 0.0
    %181 = vmatpush1.msra.mxu0 %v149
    %182 = vmatprep.subr.mxu0 0.0
    %183 = vmatpush1.msra.mxu0 %v150
    %184 = vmatprep.subr.mxu0 0.0
    %185 = vmatpush1.msra.mxu0 %v151
    %186 = vmatprep.subr.mxu0 0.0
    %187 = vmatpush1.msra.mxu0 %v152
    %188 = vmatprep.subr.mxu0 0.0
    %189 = vmatpush1.msra.mxu0 %v153
    %190 = vmatprep.subr.mxu0 0.0
    %191 = vmatpush1.msra.mxu0 %v154
    %192 = vmatprep.subr.mxu0 0.0
    %193 = vmatpush1.msra.mxu0 %v155
    %194 = vmatprep.subr.mxu0 0.0
    %195 = vmatpush1.msra.mxu0 %v156
    %196 = vmatprep.subr.mxu0 0.0
    %197 = vmatpush1.msra.mxu0 0.0
    %198 = vmatprep.subr.mxu0 0.0
    %199 = vmatpush1.msra.mxu0 0.0
    %200 = vmatprep.subr.mxu0 0.0
    %201 = vmatpush1.msra.mxu0 0.0
    %202 = vmatprep.subr.mxu0 0.0
    %203 = vmatpush1.msra.mxu0 0.0
    %204 = vmatprep.subr.mxu0 0.0
    %205 = vmatpush1.msra.mxu0 0.0
    %206 = vmatprep.subr.mxu0 0.0
    %207 = vmatpush1.msra.mxu0 0.0
    %208 = vmatprep.subr.mxu0 0.0
    %209 = vmatpush1.msra.mxu0 0.0
    %210 = vmatprep.subr.mxu0 0.0
    %211 = vmatpush1.msra.mxu0 0.0
    %212 = vmatprep.subr.mxu0 0.0
    %213 = vmatpush1.msra.mxu0 0.0
    %214 = vmatprep.subr.mxu0 0.0
    %215 = vmatpush1.msra.mxu0 0.0
    %216 = vmatprep.subr.mxu0 0.0
    %217 = vmatpush1.msra.mxu0 0.0
    %218 = vmatprep.subr.mxu0 0.0
    %219 = vmatpush1.msra.mxu0 0.0
    %220 = vmatprep.subr.mxu0 0.0
    %221 = vmatpush1.msra.mxu0 0.0
    %222 = vmatprep.subr.mxu0 0.0
    %223 = vmatpush1.msra.mxu0 0.0
    %224 = vmatprep.subr.mxu0 0.0
    %225 = vmatpush1.msra.mxu0 0.0
    %226 = vmatprep.subr.mxu0 0.0
    %227 = vmatpush1.msra.mxu0 0.0
    %228 = vmatprep.mubr.f32.mxu0 0.0
    %229 = vmatmul.mubr.f32.gmra.mrb[0].mxu0 %v138
    %v230 = vpop.f32.mrb[0].mxu0
    %v231 = vadd.f32 %v162, %v230
    %v232 = vpop.f32.mrb[0].mxu0
    %233 = vdwg.mxu0
    %234 = vst [vmem:[#allocation8] sm:$0x3] %v231
    // Predicated region
    $region34: #{tpu_custom_call.1} parent=1 // pred_check
      _
    $region35: #{tpu_custom_call.1} parent=1 // pred_check_branch
      %236 = sbr.rel (0) target = $region37
    $region36: #{tpu_custom_call.1} parent=1 // pred_region
      %s238 = ssub.s32 32, 32
      %239 = vsyncadd [#allocation4], %s238
      %s241 = sshll.u32 [#allocation8], 4
      %s242 = int_to_ptr.vmem [resolvable:$true] %s241
      %244 = dma.vmem_to_hbm [thread:$0]  %s242, 32, %s5, [#allocation4]
    $region37: #{tpu_custom_call.1} parent=1 // pred_fallthru
      _
    // Predicated region
    $region38: #{tpu_custom_call.1} parent=1 // pred_check
      _
    $region39: #{tpu_custom_call.1} parent=1 // pred_check_branch
      %246 = sbr.rel (0) target = $region41
    $region40: #{tpu_custom_call.1} parent=1 // pred_region
      %247 = dma.done [#allocation4], 32
    $region41: #{tpu_custom_call.1} parent=1 // pred_fallthru
      _
    %248 = vsyncpa [#allocation3], 1
    %249 = vsyncpa [#allocation6], 1
    %250 = vsyncpa [#allocation4], 1

</llo_original>
